<compile_context>
chip_gen: v6e
topology: v6e:2x2x1
jax: 0.10.0
libtpu: 0.0.40
codegen_flags: <defaults>
</compile_context>

<pallas_src>
import math
import jax
import jax.numpy as jnp
from jax.experimental import pallas as pl
from jax.experimental.pallas import tpu as pltpu


def _round_up(a, b):
    return (a + b - 1) // b * b


def _cdiv(a, b):
    return (a + b - 1) // b


def _token_embed_kernel(halo_ref, x_ref, w_ref, o_ref, col_ref):
    # halo_ref: (1, 1, HALO, C_in)  last HALO input rows before this L tile (row 0 replicated)
    # x_ref   : (1, TL, C_in)       current L tile of the input
    # w_ref   : (K*C_in, TN) tiled, or (K*C_in, d_w) when the weight is held fully resident
    # o_ref   : (1, TL, TN)
    # col_ref : (TL, K*C_in)        im2col scratch, persists across the d_model axis
    TL, C_in = x_ref.shape[1], x_ref.shape[2]
    HALO = halo_ref.shape[2]
    KC = w_ref.shape[0]
    K = KC // C_in
    pad0 = HALO - (K - 1)
    TN = o_ref.shape[2]

    # Build the (TL, K*C_in) tap-gathered slab once per (b, l).  The d_model axis
    # (program_id(2)) is innermost and marked 'arbitrary', so n == 0 runs first on this core.
    @pl.when(pl.program_id(2) == 0)
    def _build_im2col():
        xt = jnp.concatenate([halo_ref[0, 0], x_ref[0]], axis=0)   # (HALO + TL, C_in)
        for j in range(K):                                          # K is tiny: static unroll
            col_ref[:, j * C_in:(j + 1) * C_in] = xt[pad0 + j: pad0 + j + TL, :]

    if w_ref.shape[1] == TN:            # tiled weight (or NN == 1): block already matches
        w = w_ref[...]
    else:                               # fully-resident weight: slice this d_model tile
        off = pl.multiple_of(pl.program_id(2) * TN, 128)
        w = w_ref[:, pl.ds(off, TN)]

    prec = jax.lax.Precision.HIGHEST if col_ref.dtype == jnp.float32 else None
    o_ref[0] = jnp.dot(col_ref[...], w, preferred_element_type=jnp.float32,
                       precision=prec).astype(o_ref.dtype)


def token_embedding_forward(x, weight, *, tl_max=2048, tn_max=512, out_dtype=None):
    """Forward of TokenEmbedding_modified.

    x:      (B, L, C_in)        activations (bf16 inputs recommended: kernel is HBM-bound)
    weight: (d_model, C_in, K)  PyTorch Conv1d weight layout (cast to x.dtype)
    returns (B, L, d_model) in out_dtype (defaults to x.dtype)
    """
    B, L, C_in = x.shape
    d_model, c_in_w, K = weight.shape
    assert c_in_w == C_in
    dtype = x.dtype
    out_dtype = dtype if out_dtype is None else out_dtype
    itemsize = jnp.dtype(dtype).itemsize
    KC = K * C_in

    # ---- d_model tiling: lane-dense TN (multiple of 128), full-dim block when small ----
    if d_model <= 128:
        TN = d_model
    else:
        TN = max(128, (min(tn_max, d_model) // 128) * 128)
    NN = _cdiv(d_model, TN)
    d_w = NN * TN                                    # weight is zero-padded to this width

    # ---- L tiling ----------------------------------------------------------------------
    tl_cap = max(8, (tl_max // 8) * 8)
    TL = L if L <= tl_cap else tl_cap                # full-dim block when L fits (no padding)

    def _lane(n):
        return _round_up(max(n, 1), 128)

    def _vmem_bytes(tl):                             # rough double-buffered working set
        return (2 * tl * _lane(TN) * jnp.dtype(out_dtype).itemsize     # out
                + tl * _lane(TN) * 4                                   # f32 matmul result
                + 2 * tl * _lane(C_in) * itemsize                      # x tile
                + tl * _lane(KC) * itemsize                            # im2col scratch
                + 2 * _round_up(KC, 8) * _lane(d_w) * itemsize         # weight (worst case)
                + 2 * 8 * _lane(C_in) * itemsize)                      # halo
    while TL > 512 and _vmem_bytes(TL) > 24 * 1024 * 1024:
        TL = _round_up(TL // 2, 8)
    NL = _cdiv(L, TL)

    HALO = max(8, _round_up(K - 1, 8))               # 8-row-aligned halo slab

    # ---- tiny halo slab: rows [l*TL - HALO, l*TL) clamped at 0 => replicate padding -----
    starts = jnp.arange(NL) * TL
    hidx = jnp.clip(starts[:, None] + jnp.arange(-HALO, 0)[None, :], 0, L - 1)
    halo = jnp.take(x, hidx, axis=1)                 # (B, NL, HALO, C_in) -- negligible HBM

    # ---- weight: (d_model, C_in, K) -> tap-major (K*C_in, d_w), in the activation dtype --
    w2 = jnp.transpose(weight, (2, 1, 0)).reshape(KC, d_model).astype(dtype)
    if d_w != d_model:
        w2 = jnp.pad(w2, ((0, 0), (0, d_w - d_model)))   # weight is tiny; output is NOT padded

    # ---- weight residency: one DMA + constant index map whenever it is small ------------
    resident = (NN > 1) and (2 * KC * d_w * itemsize <= 4 * 1024 * 1024)
    if NN == 1 or resident:
        w_spec = pl.BlockSpec((KC, d_w), lambda b, l, n: (0, 0))
    else:
        w_spec = pl.BlockSpec((KC, TN), lambda b, l, n: (0, n))

    return pl.pallas_call(
        _token_embed_kernel,
        out_shape=jax.ShapeDtypeStruct((B, L, d_model), out_dtype),   # exact shape: no post-slice
        grid_spec=pltpu.PrefetchScalarGridSpec(
            num_scalar_prefetch=0,
            grid=(B, NL, NN),                         # d_model innermost: x/halo/col stay resident
            in_specs=[
                pl.BlockSpec((1, 1, HALO, C_in), lambda b, l, n: (b, l, 0, 0)),
                pl.BlockSpec((1, TL, C_in), lambda b, l, n: (b, l, 0)),
                w_spec,
            ],
            out_specs=pl.BlockSpec((1, TL, TN), lambda b, l, n: (b, l, n)),
            scratch_shapes=[pltpu.VMEM((TL, KC), dtype)],
        ),
        compiler_params=pltpu.CompilerParams(
            # n must be sequential on one core for the pl.when(n == 0) scratch init.
            dimension_semantics=("parallel", "parallel", "arbitrary"),
            vmem_limit_bytes=32 * 1024 * 1024,
        ),
    )(halo, x, w2)


def _reference(x, weight):
    """Pure-JAX reference using an explicit clamped gather (distinct formulation)."""
    B, L, C_in = x.shape
    d_model, _, K = weight.shape
    idx = jnp.clip(jnp.arange(L)[:, None] + jnp.arange(K)[None, :] - (K - 1), 0, L - 1)
    gathered = x[:, idx, :]                           # (B, L, K, C_in)
    return jnp.einsum("bljc,ocj->blo", gathered, weight,
                      precision=jax.lax.Precision.HIGHEST)


if __name__ == "__main__":
    key = jax.random.PRNGKey(0)
    k1, k2, k3, k4 = jax.random.split(key, 4)

    # --- primary small test: shapes consistent with the module forward -------------------
    B, L, C_in, d_model, K = 2, 8, 4, 32, 3
    x = jax.random.normal(k1, (B, L, C_in), dtype=jnp.float32)
    # Deterministic stand-in for kaiming_normal_(mode='fan_in', nonlinearity='leaky_relu'):
    std = math.sqrt(2.0) / math.sqrt(C_in * K)
    w = std * jax.random.normal(k2, (d_model, C_in, K), dtype=jnp.float32)

    out = jax.block_until_ready(token_embedding_forward(x, w))
    ref = _reference(x, w)
    assert out.shape == (B, L, d_model) and out.dtype == jnp.float32
    assert jnp.allclose(out, ref, atol=2e-3, rtol=2e-3), float(jnp.max(jnp.abs(out - ref)))

    # --- awkward shapes: d_model not a multiple of 128 (ragged lane writes, resident weight
    #     sliced in-kernel along d_model), K=4, odd C_in --------------------------------------
    B2, L2, C2, D2, K2 = 1, 16, 5, 200, 4
    x2 = jax.random.normal(k3, (B2, L2, C2), dtype=jnp.float32)
    w2 = 0.25 * jax.random.normal(k4, (D2, C2, K2), dtype=jnp.float32)
    out2 = jax.block_until_ready(token_embedding_forward(x2, w2))
    ref2 = _reference(x2, w2)
    assert out2.shape == (B2, L2, D2)
    assert jnp.allclose(out2, ref2, atol=2e-3, rtol=2e-3), float(jnp.max(jnp.abs(out2 - ref2)))

    # --- bf16 I/O path (recommended: kernel is HBM-write bound; accumulation stays f32) ------
    out_bf = jax.block_until_ready(
        token_embedding_forward(x.astype(jnp.bfloat16), w.astype(jnp.bfloat16)))
    ref_bf = _reference(x.astype(jnp.bfloat16).astype(jnp.float32),
                        w.astype(jnp.bfloat16).astype(jnp.float32))
    assert out_bf.dtype == jnp.bfloat16
    assert jnp.allclose(out_bf.astype(jnp.float32), ref_bf, atol=6e-2, rtol=6e-2)

    print("KERNEL_OK")
</pallas_src>

<mosaic_0001>
module attributes {stable_mosaic.version = 11 : i64} {
  func.func @_token_embed_kernel(%arg0: i32, %arg1: i32, %arg2: i32, %arg3: memref<1x1x8x4xf32, #tpu.memory_space<vmem>>, %arg4: memref<1x8x4xf32, #tpu.memory_space<vmem>>, %arg5: memref<12x32xf32, #tpu.memory_space<vmem>>, %arg6: memref<1x8x32xf32, #tpu.memory_space<vmem>>, %arg7: memref<8x12xf32, #tpu.memory_space<vmem>>) attributes {dimension_semantics = [#tpu.dimension_semantics<parallel>, #tpu.dimension_semantics<parallel>, #tpu.dimension_semantics<arbitrary>], iteration_bounds = array<i64: 2, 1, 1>, scalar_prefetch = 0 : i64, scratch_operands = 1 : i64, tpu.core_type = #tpu.core_type<tc>, window_params = [{transform_indices = @transform_0, window_bounds = array<i64: 1, 1, 8, 4>}, {transform_indices = @transform_1, window_bounds = array<i64: 1, 8, 4>}, {pipeline_mode = #tpu.pipeline_mode<synchronous>, transform_indices = @transform_2, window_bounds = array<i64: 12, 32>}, {transform_indices = @transform_3, window_bounds = array<i64: 1, 8, 32>}]} {
    %c0_i32 = arith.constant 0 : i32
    %0 = arith.cmpi eq, %arg2, %c0_i32 : i32
    %1 = arith.extui %0 : i1 to i32
    %c0_i32_0 = arith.constant 0 : i32
    %2 = arith.cmpi ne, %1, %c0_i32_0 : i32
    scf.if %2 {
      %c0_7 = arith.constant 0 : index
      %c0_8 = arith.constant 0 : index
      %c0_9 = arith.constant 0 : index
      %c0_10 = arith.constant 0 : index
      %9 = vector.load %arg3[%c0_7, %c0_8, %c0_9, %c0_10] : memref<1x1x8x4xf32, #tpu.memory_space<vmem>>, vector<1x1x8x4xf32>
      %10 = vector.shape_cast %9 : vector<1x1x8x4xf32> to vector<8x4xf32>
      %c0_11 = arith.constant 0 : index
      %c0_12 = arith.constant 0 : index
      %c0_13 = arith.constant 0 : index
      %11 = vector.load %arg4[%c0_11, %c0_12, %c0_13] : memref<1x8x4xf32, #tpu.memory_space<vmem>>, vector<1x8x4xf32>
      %12 = vector.shape_cast %11 : vector<1x8x4xf32> to vector<8x4xf32>
      %13 = tpu.concatenate %10, %12 in 0 : vector<8x4xf32>, vector<8x4xf32> -> vector<16x4xf32>
      %14 = vector.extract_strided_slice %13 {offsets = [6, 0], sizes = [8, 4], strides = [1, 1]} : vector<16x4xf32> to vector<8x4xf32>
      %c0_14 = arith.constant 0 : index
      %c0_15 = arith.constant 0 : index
      %15 = vector.load %arg7[%c0_14, %c0_15] : memref<8x12xf32, #tpu.memory_space<vmem>>, vector<8x4xf32>
      tpu.vector_store %arg7[%c0_14, %c0_15], %14 {strides = array<i32>} : memref<8x12xf32, #tpu.memory_space<vmem>>, vector<8x4xf32>,
      %16 = vector.extract_strided_slice %13 {offsets = [7, 0], sizes = [8, 4], strides = [1, 1]} : vector<16x4xf32> to vector<8x4xf32>
      %c0_16 = arith.constant 0 : index
      %c4 = arith.constant 4 : index
      %17 = vector.load %arg7[%c0_16, %c4] : memref<8x12xf32, #tpu.memory_space<vmem>>, vector<8x4xf32>
      tpu.vector_store %arg7[%c0_16, %c4], %16 {strides = array<i32>} : memref<8x12xf32, #tpu.memory_space<vmem>>, vector<8x4xf32>,
      %18 = vector.extract_strided_slice %13 {offsets = [8, 0], sizes = [8, 4], strides = [1, 1]} : vector<16x4xf32> to vector<8x4xf32>
      %c0_17 = arith.constant 0 : index
      %c8 = arith.constant 8 : index
      %19 = vector.load %arg7[%c0_17, %c8] : memref<8x12xf32, #tpu.memory_space<vmem>>, vector<8x4xf32>
      tpu.vector_store %arg7[%c0_17, %c8], %18 {strides = array<i32>} : memref<8x12xf32, #tpu.memory_space<vmem>>, vector<8x4xf32>,
    } else {
    }
    %c0 = arith.constant 0 : index
    %c0_1 = arith.constant 0 : index
    %3 = vector.load %arg5[%c0, %c0_1] : memref<12x32xf32, #tpu.memory_space<vmem>>, vector<12x32xf32>
    %c0_2 = arith.constant 0 : index
    %c0_3 = arith.constant 0 : index
    %4 = vector.load %arg7[%c0_2, %c0_3] : memref<8x12xf32, #tpu.memory_space<vmem>>, vector<8x12xf32>
    %cst = arith.constant dense<0.000000e+00> : vector<8x32xf32>
    %5 = tpu.matmul %4, %3, %cst {dimension_numbers = #tpu.dot_dimension_numbers<[1], [0], [0], [1], [0, 0, 1, 1], [], []>, precision = #tpu.contract_precision<fp32>} : vector<8x12xf32>, vector<12x32xf32>, vector<8x32xf32> -> vector<8x32xf32>
    %c0_4 = arith.constant 0 : index
    %c0_5 = arith.constant 0 : index
    %c0_6 = arith.constant 0 : index
    %6 = vector.load %arg6[%c0_4, %c0_5, %c0_6] : memref<1x8x32xf32, #tpu.memory_space<vmem>>, vector<1x8x32xf32>
    %7 = vector.shape_cast %6 : vector<1x8x32xf32> to vector<8x32xf32>
    %8 = vector.shape_cast %5 : vector<8x32xf32> to vector<1x8x32xf32>
    tpu.vector_store %arg6[%c0_4, %c0_5, %c0_6], %8 {strides = array<i32>} : memref<1x8x32xf32, #tpu.memory_space<vmem>>, vector<1x8x32xf32>,
    return
  }
  func.func @transform_0(%arg0: i32, %arg1: i32, %arg2: i32) -> (i32, i32, i32, i32) {
    %c0_i32 = arith.constant 0 : i32
    %c0_i32_0 = arith.constant 0 : i32
    %c0_i32_1 = arith.constant 0 : i32
    return %arg0, %arg1, %c0_i32, %c0_i32_0 : i32, i32, i32, i32
  }
  func.func @transform_1(%arg0: i32, %arg1: i32, %arg2: i32) -> (i32, i32, i32) {
    %c0_i32 = arith.constant 0 : i32
    %c0_i32_0 = arith.constant 0 : i32
    return %arg0, %arg1, %c0_i32 : i32, i32, i32
  }
  func.func @transform_2(%arg0: i32, %arg1: i32, %arg2: i32) -> (i32, i32) {
    %c0_i32 = arith.constant 0 : i32
    %c0_i32_0 = arith.constant 0 : i32
    %c0_i32_1 = arith.constant 0 : i32
    return %c0_i32, %c0_i32_0 : i32, i32
  }
  func.func @transform_3(%arg0: i32, %arg1: i32, %arg2: i32) -> (i32, i32, i32) {
    %c0_i32 = arith.constant 0 : i32
    return %arg0, %arg1, %arg2 : i32, i32, i32
  }
}

</mosaic_0001>

<llo_original>
// kernel: tpu_custom_call.1
$region0: #{tpu_custom_call.1}
  #allocation0 [shape = 'u32[]', space=smem, size = 0x4, offset = 0x4, fixed_abs, tag = 'smem constant byte address 0x4 - core index']
  #allocation1 [shape = 'u32[144,128]{1,0:T(1,128)}', space=vmem, size = 0x12000, scoped, tag = 'internal scratch']
  #allocation2 [shape = 'f32[8,12]{1,0:T(8,128)}', space=vmem, size = 0x1000, scoped, tag = 'scratch operand']
  %s0 = inlined_call_operand.vmem [shape: f32[2,1,8,4], index: 0, kind: input, shape index: {}]
  %s1 = inlined_call_operand.vmem [shape: f32[2,8,4], index: 1, kind: input, shape index: {}]
  %s2 = inlined_call_operand.vmem [shape: f32[12,32], index: 2, kind: input, shape index: {}]
  %s3 = inlined_call_operand.hbm [shape: f32[2,8,32], index: 3, kind: output, shape index: {}]
  %s4 = sld [smem:[#allocation0]]
  $region49: #{tpu_custom_call.1} parent=0
    _
  %s6 = ssub.s32 1, %s4
  %s7 = scalar_select 0, %s6, %s4
  $region1: #{tpu_custom_call.1} parent=0
    #allocation3 [shape = 'u8[8192]{0}', space=vmem, size = 0x2000, scoped, tag = 'output window, operand 0']
    #allocation4 [shape = 's32[2]{0}', space=sflag, size = 0x8, scoped, tag = 'scoped memory for tpu_custom_call.1']
    %8 = vsyncpa [#allocation4], 0
    %s9 = scalar_lea.sflag [#allocation4], 1
    %10 = vsyncpa %s9, 0
    loop: start=0, step=1, limit=4
    $region2: #{tpu_custom_call.1} parent=1 // loop_pre_header
      _
    $region3: #{tpu_custom_call.1} parent=1 // loop_header
      %s12 = sphi 0, %s16
      %p13 = scmp.ge.s32.totalorder %s12, 4
      %s19 = sphi 0, %s38
      %s20 = sphi 0, %s34
      %s21 = sphi 0, %s30
      %s22 = sphi 0, %s19
      %s23 = sphi 0, %s20
      %s24 = sphi 0, %s21
      %s25 = sphi 0, %s22
      %s26 = sphi 0, %s23
      %s27 = sphi 0, %s24
      %s43 = sphi 0, %s45
      %s46 = sphi 0, %s43
      %s47 = sphi 0, %s46
      %s63 = sphi 0, %s47
      %s71 = sphi 0, %s73
      %s74 = sphi 0, %s71
      %s75 = sphi 0, %s74
      %s91 = sphi 0, %s75
      %s95 = sphi 0, %s95
      %s97 = sphi 0, %s95
      %s98 = sphi 0, %s97
      %s112 = sphi 0, %s98
      %s122 = sphi 0, %s124
      %s125 = sphi 0, %s122
      %s126 = sphi 0, %s125
      %s142 = sphi 0, %s126
    $region4: #{tpu_custom_call.1} parent=1 // loop_header_branch
      %15 = sbr.rel (%p13) target = $region8
    $region5: #{tpu_custom_call.1} parent=1 // loop_body
      %s17 = ssub.s32 %s12, 1
      %s18 = ssub.s32 %s12, 2
      %s28 = sadd.s32 1, %s21
      %p29 = scmp.ge.s32.totalorder %s28, 1
      %s30 = scalar_select %p29, 0, %s28
      %s31 = sadd.s32 1, %s20
      %s32 = scalar_select %p29, %s31, %s20
      %p33 = scmp.ge.s32.totalorder %s32, 1
      %s34 = scalar_select %p33, 0, %s32
      %s35 = sadd.s32 1, %s19
      %s36 = scalar_select %p33, %s35, %s19
      %p37 = scmp.ge.s32.totalorder %s36, 2
      %s38 = scalar_select %p37, 0, %s36
      %s39 = ssub.s32 %s19, %s38
      %s40 = ssub.s32 %s20, %s34
      %s41 = sor.u32 %s39, %s40
      %p42 = scmp.eq.s32.totalorder %s41, 0
      %s44 = sadd.s32 %s43, 1
      %s45 = scalar_select %p42, %s43, %s44
      %p48 = pneg %p42
      %p49 = scmp.eq.s32.totalorder %s12, 1
      %p50 = por %p48, %p49
      %p51 = scmp.ne.s32.totalorder %s43, %s46
      %p52 = scmp.eq.s32.totalorder %s12, 0
      %p53 = por %p51, %p52
      %p54 = scmp.ne.s32.totalorder %s43, %s46
      %p55 = scmp.eq.s32.totalorder %s17, 1
      %p56 = por %p54, %p55
      %p57 = scmp.ne.s32.totalorder %s46, %s47
      %p58 = scmp.eq.s32.totalorder %s17, 0
      %p59 = por %p57, %p58
      %p60 = scmp.ne.s32.totalorder %s46, %s47
      %p61 = scmp.eq.s32.totalorder %s18, 1
      %p62 = por %p60, %p61
      %p64 = scmp.ne.s32.totalorder %s47, %s63
      %p65 = scmp.eq.s32.totalorder %s18, 0
      %p66 = por %p64, %p65
      %s67 = ssub.s32 %s19, %s38
      %s68 = ssub.s32 %s20, %s34
      %s69 = sor.u32 %s67, %s68
      %p70 = scmp.eq.s32.totalorder %s69, 0
      %s72 = sadd.s32 %s71, 1
      %s73 = scalar_select %p70, %s71, %s72
      %p76 = pneg %p70
      %p77 = scmp.eq.s32.totalorder %s12, 1
      %p78 = por %p76, %p77
      %p79 = scmp.ne.s32.totalorder %s71, %s74
      %p80 = scmp.eq.s32.totalorder %s12, 0
      %p81 = por %p79, %p80
      %p82 = scmp.ne.s32.totalorder %s71, %s74
      %p83 = scmp.eq.s32.totalorder %s17, 1
      %p84 = por %p82, %p83
      %p85 = scmp.ne.s32.totalorder %s74, %s75
      %p86 = scmp.eq.s32.totalorder %s17, 0
      %p87 = por %p85, %p86
      %p88 = scmp.ne.s32.totalorder %s74, %s75
      %p89 = scmp.eq.s32.totalorder %s18, 1
      %p90 = por %p88, %p89
      %p92 = scmp.ne.s32.totalorder %s75, %s91
      %p93 = scmp.eq.s32.totalorder %s18, 0
      %p94 = por %p92, %p93
      %s96 = sadd.s32 %s95, 1
      %p99 = scmp.eq.s32.totalorder %s12, 1
      %p100 = scmp.ne.s32.totalorder %s95, %s97
      %p101 = scmp.eq.s32.totalorder %s12, 0
      %p102 = por %p100, %p101
      %p103 = scmp.ne.s32.totalorder %s95, %s97
      %p104 = scmp.eq.s32.totalorder %s17, 1
      %p105 = por %p103, %p104
      %p106 = scmp.ne.s32.totalorder %s97, %s98
      %p107 = scmp.eq.s32.totalorder %s17, 0
      %p108 = por %p106, %p107
      %p109 = scmp.ne.s32.totalorder %s97, %s98
      %p110 = scmp.eq.s32.totalorder %s18, 1
      %p111 = por %p109, %p110
      %p113 = scmp.ne.s32.totalorder %s98, %s112
      %p114 = scmp.eq.s32.totalorder %s18, 0
      %p115 = por %p113, %p114
      %s116 = ssub.s32 %s19, %s38
      %s117 = ssub.s32 %s20, %s34
      %s118 = sor.u32 %s116, %s117
      %s119 = ssub.s32 %s21, %s30
      %s120 = sor.u32 %s118, %s119
      %p121 = scmp.eq.s32.totalorder %s120, 0
      %s123 = sadd.s32 %s122, 1
      %s124 = scalar_select %p121, %s122, %s123
      %p127 = pneg %p121
      %p128 = scmp.eq.s32.totalorder %s12, 1
      %p129 = por %p127, %p128
      %p130 = scmp.ne.s32.totalorder %s122, %s125
      %p131 = scmp.eq.s32.totalorder %s12, 0
      %p132 = por %p130, %p131
      %p133 = scmp.ne.s32.totalorder %s122, %s125
      %p134 = scmp.eq.s32.totalorder %s17, 1
      %p135 = por %p133, %p134
      %p136 = scmp.ne.s32.totalorder %s125, %s126
      %p137 = scmp.eq.s32.totalorder %s17, 0
      %p138 = por %p136, %p137
      %p139 = scmp.ne.s32.totalorder %s125, %s126
      %p140 = scmp.eq.s32.totalorder %s18, 1
      %p141 = por %p139, %p140
      %p143 = scmp.ne.s32.totalorder %s126, %s142
      %p144 = scmp.eq.s32.totalorder %s18, 0
      %p145 = por %p143, %p144
      %p146 = scmp.le.s32.totalorder 1, %s12
      %p147 = scmp.lt.s32.totalorder %s12, 3
      %p148 = pnand %p146, %p147
      %p149 = pneg %p148
      // Predicated region
      $region9: #{tpu_custom_call.1} parent=5 // pred_check
        _
      $region10: #{tpu_custom_call.1} parent=5 // pred_check_branch
        %151 = sbr.rel (%p148) target = $region12
      $region11: #{tpu_custom_call.1} parent=5 // pred_region
        %s152 = ssub.s32 %s12, 1
        // Predicated region
        $region13: #{tpu_custom_call.1} parent=11 // pred_check
          %p153 = pneg %p108
        $region14: #{tpu_custom_call.1} parent=11 // pred_check_branch
          %155 = sbr.rel (%p153) target = $region16
        $region15: #{tpu_custom_call.1} parent=11 // pred_region
          _
        $region16: #{tpu_custom_call.1} parent=11 // pred_fallthru
          _
      $region12: #{tpu_custom_call.1} parent=5 // pred_fallthru
        _
      %p156 = scmp.lt.s32.totalorder %s12, 2
      // Predicated region
      $region17: #{tpu_custom_call.1} parent=5 // pred_check
        %p157 = pneg %p156
      $region18: #{tpu_custom_call.1} parent=5 // pred_check_branch
        %159 = sbr.rel (%p157) target = $region20
      $region19: #{tpu_custom_call.1} parent=5 // pred_region
        // Predicated region
        $region21: #{tpu_custom_call.1} parent=19 // pred_check
          %p160 = pneg %p53
        $region22: #{tpu_custom_call.1} parent=19 // pred_check_branch
          %162 = sbr.rel (%p160) target = $region24
        $region23: #{tpu_custom_call.1} parent=19 // pred_region
          %p163 = scmp.lt.s32.totalorder %s19, 1
          %s164 = scalar_select %p163, %s19, 1
          %p165 = scmp.lt.s32.totalorder %s20, 0
          %s166 = scalar_select %p165, %s20, 0
          %s167 = sadd.s32 %s166, %s164
          %s168 = smul.addr %s167, 8
          %s169 = scalar_lea.vmem %s0, %s168
        $region24: #{tpu_custom_call.1} parent=19 // pred_fallthru
          _
        // Predicated region
        $region25: #{tpu_custom_call.1} parent=19 // pred_check
          %p170 = pneg %p81
        $region26: #{tpu_custom_call.1} parent=19 // pred_check_branch
          %172 = sbr.rel (%p170) target = $region28
        $region27: #{tpu_custom_call.1} parent=19 // pred_region
          %p173 = scmp.lt.s32.totalorder %s19, 1
          %s174 = scalar_select %p173, %s19, 1
          %p175 = scmp.lt.s32.totalorder %s20, 0
          %s176 = scalar_select %p175, %s20, 0
          %s177 = sadd.s32 %s176, %s174
          %s178 = smul.addr %s177, 8
          %s179 = scalar_lea.vmem %s1, %s178
        $region28: #{tpu_custom_call.1} parent=19 // pred_fallthru
          _
      $region20: #{tpu_custom_call.1} parent=5 // pred_fallthru
        _
      %p180 = scmp.le.s32.totalorder 1, %s12
      %p181 = scmp.lt.s32.totalorder %s12, 3
      %p182 = pnand %p180, %p181
      %p183 = pneg %p182
      // Predicated region
      $region29: #{tpu_custom_call.1} parent=5 // pred_check
        _
      $region30: #{tpu_custom_call.1} parent=5 // pred_check_branch
        %185 = sbr.rel (%p182) target = $region32
      $region31: #{tpu_custom_call.1} parent=5 // pred_region
        %s186 = ssub.s32 %s12, 1
        %p187 = scmp.lt.s32.totalorder %s22, 1
        %s188 = scalar_select %p187, %s22, 1
        %p189 = scmp.lt.s32.totalorder %s23, 0
        %s190 = scalar_select %p189, %s23, 0
        %s191 = sadd.s32 %s190, %s188
        %s192 = smul.addr %s191, 8
        %s193 = scalar_lea.vmem %s0, %s192
        %p194 = pneg %p59
        %p195 = pneg %p56
        %p196 = scmp.lt.s32.totalorder %s22, 1
        %s197 = scalar_select %p196, %s22, 1
        %p198 = scmp.lt.s32.totalorder %s23, 0
        %s199 = scalar_select %p198, %s23, 0
        %s200 = sadd.s32 %s199, %s197
        %s201 = smul.addr %s200, 8
        %s202 = scalar_lea.vmem %s1, %s201
        %p203 = pneg %p87
        %p204 = pneg %p84
        %p205 = pneg %p108
        %p206 = pneg %p105
        %p207 = pneg %p138
        %p208 = pneg %p135
        %s209 = sand.u32 %s125, 1
        %s210 = scalar_lea.sflag [#allocation4], %s209
        %s211 = sand.u32 %s125, 1
        %s212 = smul.addr %s211, 8
        %s213 = scalar_lea.vmem [#allocation3], %s212
        %p214 = scmp.lt.s32.totalorder %s22, 1
        %s215 = scalar_select %p214, %s22, 1
        %p216 = scmp.lt.s32.totalorder %s23, 0
        %s217 = scalar_select %p216, %s23, 0
        %s218 = sadd.s32 %s217, %s215
        %s219 = smul.addr %s218, 8
        %s220 = scalar_lea.vmem %s0, %s219
        %p221 = scmp.lt.s32.totalorder %s22, 1
        %s222 = scalar_select %p221, %s22, 1
        %p223 = scmp.lt.s32.totalorder %s23, 0
        %s224 = scalar_select %p223, %s23, 0
        %s225 = sadd.s32 %s224, %s222
        %s226 = smul.addr %s225, 8
        %s227 = scalar_lea.vmem %s1, %s226
        %p228 = scmp.eq.s32.totalorder %s24, 0
        // Predicated region
        $region33: #{tpu_custom_call.1} parent=31 // pred_check
          %p229 = pneg %p228
        $region34: #{tpu_custom_call.1} parent=31 // pred_check_branch
          %231 = sbr.rel (%p229) target = $region36
        $region35: #{tpu_custom_call.1} parent=31 // pred_region
          %v232 = vld [vmem:[%s220] sm:$0xff]
          %v233 = vld [vmem:[%s227] sm:$0xff]
          %vm234 = vcmask 31750
          %235 = vst.msk [vmem:[#allocation2 - $0x6] sm:$0xc0] %vm234, %v232
          %vm236 = vcmask 29696
          %237 = vst.msk [vmem:[#allocation2 + $0x2] sm:$0x3f] %vm236, %v233
          %240 = vrot.lane.b32.xlu0 %v232, 4
          %v241 = vpop.permute.xlu0 %240
          %242 = vrot.lane.b32.xlu0 %v233, 4
          %v243 = vpop.permute.xlu0 %242
          %vm246 = vcmask 64551
          %247 = vst.msk [vmem:[#allocation2 - $0x7] sm:$0x80] %vm246, %v241
          %vm248 = vcmask 63520
          %249 = vst.msk [vmem:[#allocation2 + $0x1] sm:$0x7f] %vm248, %v243
          %250 = vrot.lane.b32.xlu0 %v233, 8
          %v251 = vpop.permute.xlu0 %250
          %vm253 = vcmask 97344
          %254 = vst.msk [vmem:[#allocation2] sm:$0xff] %vm253, %v251
        $region36: #{tpu_custom_call.1} parent=31 // pred_fallthru
          _
        %v255 = vld [vmem:[%s2] sm:$0xff]
        %v256 = vld [vmem:[%s2 + $0x8] sm:$0xf]
        %v257 = vld [vmem:[#allocation2] sm:$0xff]
        %vm258 = vcmask 97280
        %v260 = vsel %vm258, %v257, 0
        %vm262 = vcmask 1043456
        %v264 = vsel %vm262, %v256, 0
        %266 = vmatprep.subr.mxu0 0.0
        %267 = vmatpush1.msra.mxu0 0.0
        %268 = vmatprep.subr.mxu0 0.0
        %269 = vmatpush1.msra.mxu0 0.0
        %270 = vmatprep.subr.mxu0 0.0
        %271 = vmatpush1.msra.mxu0 0.0
        %272 = vmatprep.subr.mxu0 0.0
        %273 = vmatpush1.msra.mxu0 0.0
        %274 = vmatprep.subr.mxu0 0.0
        %275 = vmatpush1.msra.mxu0 0.0
        %276 = vmatprep.subr.mxu0 0.0
        %277 = vmatpush1.msra.mxu0 0.0
        %278 = vmatprep.subr.mxu0 0.0
        %279 = vmatpush1.msra.mxu0 0.0
        %280 = vmatprep.subr.mxu0 0.0
        %281 = vmatpush1.msra.mxu0 0.0
        %282 = vmatprep.subr.mxu0 0.0
        %283 = vmatpush1.msra.mxu0 0.0
        %284 = vmatprep.subr.mxu0 0.0
        %285 = vmatpush1.msra.mxu0 0.0
        %286 = vmatprep.subr.mxu0 0.0
        %287 = vmatpush1.msra.mxu0 0.0
        %288 = vmatprep.subr.mxu0 0.0
        %289 = vmatpush1.msra.mxu0 0.0
        %290 = vmatprep.subr.mxu0 0.0
        %291 = vmatpush1.msra.mxu0 0.0
        %292 = vmatprep.subr.mxu0 0.0
        %293 = vmatpush1.msra.mxu0 0.0
        %294 = vmatprep.subr.mxu0 0.0
        %v295 = vand.u32 %v264, 4294901760
        %296 = vmatpush1.msra.mxu0 %v295
        %297 = vmatprep.subr.mxu0 0.0
        %v298 = vand.u32 %v255, 4294901760
        %299 = vmatpush1.msra.mxu0 %v298
        %300 = vmatprep.subr.mxu0 0.0
        %301 = vmatpush2.msra.mxu0 0.0
        %302 = vmatprep.subr.mxu0 0.0
        %303 = vmatpush2.msra.mxu0 0.0
        %304 = vmatprep.subr.mxu0 0.0
        %305 = vmatpush2.msra.mxu0 0.0
        %306 = vmatprep.subr.mxu0 0.0
        %307 = vmatpush2.msra.mxu0 0.0
        %308 = vmatprep.subr.mxu0 0.0
        %309 = vmatpush2.msra.mxu0 0.0
        %310 = vmatprep.subr.mxu0 0.0
        %311 = vmatpush2.msra.mxu0 0.0
        %312 = vmatprep.subr.mxu0 0.0
        %313 = vmatpush2.msra.mxu0 0.0
        %314 = vmatprep.subr.mxu0 0.0
        %315 = vmatpush2.msra.mxu0 0.0
        %316 = vmatprep.subr.mxu0 0.0
        %317 = vmatpush2.msra.mxu0 0.0
        %318 = vmatprep.subr.mxu0 0.0
        %319 = vmatpush2.msra.mxu0 0.0
        %320 = vmatprep.subr.mxu0 0.0
        %321 = vmatpush2.msra.mxu0 0.0
        %322 = vmatprep.subr.mxu0 0.0
        %323 = vmatpush2.msra.mxu0 0.0
        %324 = vmatprep.subr.mxu0 0.0
        %325 = vmatpush2.msra.mxu0 0.0
        %326 = vmatprep.subr.mxu0 0.0
        %327 = vmatpush2.msra.mxu0 0.0
        %328 = vmatprep.subr.mxu0 0.0
        %329 = vmatpush2.msra.mxu0 0.0
        %330 = vmatprep.subr.mxu0 0.0
        %331 = vmatpush2.msra.mxu0 0.0
        %332 = vmatprep.mubr.f32.mxu0 0.0
        %v333 = vand.u32 %v260, 4294901760
        %v334 = vsub.f32 %v260, %v333
        %v335 = vand.u32 %v334, 4294901760
        %v336 = vsub.f32 %v334, %v335
        %v337 = vand.u32 %v336, 4294901760
        %338 = vmatmul.mubr.f32.gmra.mxu0 %v337
        %v339 = vpop.f32.mrf.mxu0
        %v340 = vadd.f32 0.0, %v339
        %v341 = vpop.f32.mrf.mxu0
        %342 = vdwg.mxu0
        %343 = vmatprep.subr.mxu0 0.0
        %344 = vmatpush1.msra.mxu0 0.0
        %345 = vmatprep.subr.mxu0 0.0
        %346 = vmatpush1.msra.mxu0 0.0
        %347 = vmatprep.subr.mxu0 0.0
        %348 = vmatpush1.msra.mxu0 0.0
        %349 = vmatprep.subr.mxu0 0.0
        %350 = vmatpush1.msra.mxu0 0.0
        %351 = vmatprep.subr.mxu0 0.0
        %352 = vmatpush1.msra.mxu0 0.0
        %353 = vmatprep.subr.mxu0 0.0
        %354 = vmatpush1.msra.mxu0 0.0
        %355 = vmatprep.subr.mxu0 0.0
        %356 = vmatpush1.msra.mxu0 0.0
        %357 = vmatprep.subr.mxu0 0.0
        %358 = vmatpush1.msra.mxu0 0.0
        %359 = vmatprep.subr.mxu0 0.0
        %360 = vmatpush1.msra.mxu0 0.0
        %361 = vmatprep.subr.mxu0 0.0
        %362 = vmatpush1.msra.mxu0 0.0
        %363 = vmatprep.subr.mxu0 0.0
        %364 = vmatpush1.msra.mxu0 0.0
        %365 = vmatprep.subr.mxu0 0.0
        %366 = vmatpush1.msra.mxu0 0.0
        %367 = vmatprep.subr.mxu0 0.0
        %368 = vmatpush1.msra.mxu0 0.0
        %369 = vmatprep.subr.mxu0 0.0
        %370 = vmatpush1.msra.mxu0 0.0
        %371 = vmatprep.subr.mxu0 0.0
        %v372 = vand.u32 %v264, 4294901760
        %v373 = vsub.f32 %v264, %v372
        %v374 = vand.u32 %v373, 4294901760
        %v375 = vsub.f32 %v373, %v374
        %v376 = vand.u32 %v375, 4294901760
        %377 = vmatpush1.msra.mxu0 %v376
        %378 = vmatprep.subr.mxu0 0.0
        %v379 = vand.u32 %v255, 4294901760
        %v380 = vsub.f32 %v255, %v379
        %v381 = vand.u32 %v380, 4294901760
        %v382 = vsub.f32 %v380, %v381
        %v383 = vand.u32 %v382, 4294901760
        %384 = vmatpush1.msra.mxu0 %v383
        %385 = vmatprep.subr.mxu0 0.0
        %386 = vmatpush2.msra.mxu0 0.0
        %387 = vmatprep.subr.mxu0 0.0
        %388 = vmatpush2.msra.mxu0 0.0
        %389 = vmatprep.subr.mxu0 0.0
        %390 = vmatpush2.msra.mxu0 0.0
        %391 = vmatprep.subr.mxu0 0.0
        %392 = vmatpush2.msra.mxu0 0.0
        %393 = vmatprep.subr.mxu0 0.0
        %394 = vmatpush2.msra.mxu0 0.0
        %395 = vmatprep.subr.mxu0 0.0
        %396 = vmatpush2.msra.mxu0 0.0
        %397 = vmatprep.subr.mxu0 0.0
        %398 = vmatpush2.msra.mxu0 0.0
        %399 = vmatprep.subr.mxu0 0.0
        %400 = vmatpush2.msra.mxu0 0.0
        %401 = vmatprep.subr.mxu0 0.0
        %402 = vmatpush2.msra.mxu0 0.0
        %403 = vmatprep.subr.mxu0 0.0
        %404 = vmatpush2.msra.mxu0 0.0
        %405 = vmatprep.subr.mxu0 0.0
        %406 = vmatpush2.msra.mxu0 0.0
        %407 = vmatprep.subr.mxu0 0.0
        %408 = vmatpush2.msra.mxu0 0.0
        %409 = vmatprep.subr.mxu0 0.0
        %410 = vmatpush2.msra.mxu0 0.0
        %411 = vmatprep.subr.mxu0 0.0
        %412 = vmatpush2.msra.mxu0 0.0
        %413 = vmatprep.subr.mxu0 0.0
        %414 = vmatpush2.msra.mxu0 0.0
        %415 = vmatprep.subr.mxu0 0.0
        %416 = vmatpush2.msra.mxu0 0.0
        %417 = vmatprep.mubr.f32.mxu0 0.0
        %v418 = vand.u32 %v260, 4294901760
        %419 = vmatmul.mubr.f32.gmra.mxu0 %v418
        %v420 = vpop.f32.mrf.mxu0
        %v421 = vadd.f32 %v340, %v420
        %v422 = vpop.f32.mrf.mxu0
        %423 = vdwg.mxu0
        %424 = vmatprep.subr.mxu0 0.0
        %425 = vmatpush1.msra.mxu0 0.0
        %426 = vmatprep.subr.mxu0 0.0
        %427 = vmatpush1.msra.mxu0 0.0
        %428 = vmatprep.subr.mxu0 0.0
        %429 = vmatpush1.msra.mxu0 0.0
        %430 = vmatprep.subr.mxu0 0.0
        %431 = vmatpush1.msra.mxu0 0.0
        %432 = vmatprep.subr.mxu0 0.0
        %433 = vmatpush1.msra.mxu0 0.0
        %434 = vmatprep.subr.mxu0 0.0
        %435 = vmatpush1.msra.mxu0 0.0
        %436 = vmatprep.subr.mxu0 0.0
        %437 = vmatpush1.msra.mxu0 0.0
        %438 = vmatprep.subr.mxu0 0.0
        %439 = vmatpush1.msra.mxu0 0.0
        %440 = vmatprep.subr.mxu0 0.0
        %441 = vmatpush1.msra.mxu0 0.0
        %442 = vmatprep.subr.mxu0 0.0
        %443 = vmatpush1.msra.mxu0 0.0
        %444 = vmatprep.subr.mxu0 0.0
        %445 = vmatpush1.msra.mxu0 0.0
        %446 = vmatprep.subr.mxu0 0.0
        %447 = vmatpush1.msra.mxu0 0.0
        %448 = vmatprep.subr.mxu0 0.0
        %449 = vmatpush1.msra.mxu0 0.0
        %450 = vmatprep.subr.mxu0 0.0
        %451 = vmatpush1.msra.mxu0 0.0
        %452 = vmatprep.subr.mxu0 0.0
        %v453 = vand.u32 %v264, 4294901760
        %v454 = vsub.f32 %v264, %v453
        %455 = vmatpush1.msra.mxu0 %v454
        %456 = vmatprep.subr.mxu0 0.0
        %v457 = vand.u32 %v255, 4294901760
        %v458 = vsub.f32 %v255, %v457
        %459 = vmatpush1.msra.mxu0 %v458
        %460 = vmatprep.subr.mxu0 0.0
        %461 = vmatpush2.msra.mxu0 0.0
        %462 = vmatprep.subr.mxu0 0.0
        %463 = vmatpush2.msra.mxu0 0.0
        %464 = vmatprep.subr.mxu0 0.0
        %465 = vmatpush2.msra.mxu0 0.0
        %466 = vmatprep.subr.mxu0 0.0
        %467 = vmatpush2.msra.mxu0 0.0
        %468 = vmatprep.subr.mxu0 0.0
        %469 = vmatpush2.msra.mxu0 0.0
        %470 = vmatprep.subr.mxu0 0.0
        %471 = vmatpush2.msra.mxu0 0.0
        %472 = vmatprep.subr.mxu0 0.0
        %473 = vmatpush2.msra.mxu0 0.0
        %474 = vmatprep.subr.mxu0 0.0
        %475 = vmatpush2.msra.mxu0 0.0
        %476 = vmatprep.subr.mxu0 0.0
        %477 = vmatpush2.msra.mxu0 0.0
        %478 = vmatprep.subr.mxu0 0.0
        %479 = vmatpush2.msra.mxu0 0.0
        %480 = vmatprep.subr.mxu0 0.0
        %481 = vmatpush2.msra.mxu0 0.0
        %482 = vmatprep.subr.mxu0 0.0
        %483 = vmatpush2.msra.mxu0 0.0
        %484 = vmatprep.subr.mxu0 0.0
        %485 = vmatpush2.msra.mxu0 0.0
        %486 = vmatprep.subr.mxu0 0.0
        %487 = vmatpush2.msra.mxu0 0.0
        %488 = vmatprep.subr.mxu0 0.0
        %489 = vmatpush2.msra.mxu0 0.0
        %490 = vmatprep.subr.mxu0 0.0
        %491 = vmatpush2.msra.mxu0 0.0
        %492 = vmatprep.mubr.f32.mxu0 0.0
        %v493 = vand.u32 %v260, 4294901760
        %v494 = vsub.f32 %v260, %v493
        %495 = vmatmul.mubr.f32.gmra.mxu0 %v494
        %v496 = vpop.f32.mrf.mxu0
        %v497 = vadd.f32 %v421, %v496
        %v498 = vpop.f32.mrf.mxu0
        %499 = vdwg.mxu0
        %500 = vmatprep.subr.mxu0 0.0
        %501 = vmatpush1.msra.mxu0 0.0
        %502 = vmatprep.subr.mxu0 0.0
        %503 = vmatpush1.msra.mxu0 0.0
        %504 = vmatprep.subr.mxu0 0.0
        %505 = vmatpush1.msra.mxu0 0.0
        %506 = vmatprep.subr.mxu0 0.0
        %507 = vmatpush1.msra.mxu0 0.0
        %508 = vmatprep.subr.mxu0 0.0
        %509 = vmatpush1.msra.mxu0 0.0
        %510 = vmatprep.subr.mxu0 0.0
        %511 = vmatpush1.msra.mxu0 0.0
        %512 = vmatprep.subr.mxu0 0.0
        %513 = vmatpush1.msra.mxu0 0.0
        %514 = vmatprep.subr.mxu0 0.0
        %515 = vmatpush1.msra.mxu0 0.0
        %516 = vmatprep.subr.mxu0 0.0
        %517 = vmatpush1.msra.mxu0 0.0
        %518 = vmatprep.subr.mxu0 0.0
        %519 = vmatpush1.msra.mxu0 0.0
        %520 = vmatprep.subr.mxu0 0.0
        %521 = vmatpush1.msra.mxu0 0.0
        %522 = vmatprep.subr.mxu0 0.0
        %523 = vmatpush1.msra.mxu0 0.0
        %524 = vmatprep.subr.mxu0 0.0
        %525 = vmatpush1.msra.mxu0 0.0
        %526 = vmatprep.subr.mxu0 0.0
        %527 = vmatpush1.msra.mxu0 0.0
        %528 = vmatprep.subr.mxu0 0.0
        %v529 = vand.u32 %v264, 4294901760
        %530 = vmatpush1.msra.mxu0 %v529
        %531 = vmatprep.subr.mxu0 0.0
        %v532 = vand.u32 %v255, 4294901760
        %533 = vmatpush1.msra.mxu0 %v532
        %534 = vmatprep.subr.mxu0 0.0
        %535 = vmatpush2.msra.mxu0 0.0
        %536 = vmatprep.subr.mxu0 0.0
        %537 = vmatpush2.msra.mxu0 0.0
        %538 = vmatprep.subr.mxu0 0.0
        %539 = vmatpush2.msra.mxu0 0.0
        %540 = vmatprep.subr.mxu0 0.0
        %541 = vmatpush2.msra.mxu0 0.0
        %542 = vmatprep.subr.mxu0 0.0
        %543 = vmatpush2.msra.mxu0 0.0
        %544 = vmatprep.subr.mxu0 0.0
        %545 = vmatpush2.msra.mxu0 0.0
        %546 = vmatprep.subr.mxu0 0.0
        %547 = vmatpush2.msra.mxu0 0.0
        %548 = vmatprep.subr.mxu0 0.0
        %549 = vmatpush2.msra.mxu0 0.0
        %550 = vmatprep.subr.mxu0 0.0
        %551 = vmatpush2.msra.mxu0 0.0
        %552 = vmatprep.subr.mxu0 0.0
        %553 = vmatpush2.msra.mxu0 0.0
        %554 = vmatprep.subr.mxu0 0.0
        %555 = vmatpush2.msra.mxu0 0.0
        %556 = vmatprep.subr.mxu0 0.0
        %557 = vmatpush2.msra.mxu0 0.0
        %558 = vmatprep.subr.mxu0 0.0
        %559 = vmatpush2.msra.mxu0 0.0
        %560 = vmatprep.subr.mxu0 0.0
        %561 = vmatpush2.msra.mxu0 0.0
        %562 = vmatprep.subr.mxu0 0.0
        %563 = vmatpush2.msra.mxu0 0.0
        %564 = vmatprep.subr.mxu0 0.0
        %565 = vmatpush2.msra.mxu0 0.0
        %566 = vmatprep.mubr.f32.mxu0 0.0
        %v567 = vand.u32 %v260, 4294901760
        %v568 = vsub.f32 %v260, %v567
        %v569 = vand.u32 %v568, 4294901760
        %570 = vmatmul.mubr.f32.gmra.mxu0 %v569
        %v571 = vpop.f32.mrf.mxu0
        %v572 = vadd.f32 %v497, %v571
        %v573 = vpop.f32.mrf.mxu0
        %574 = vdwg.mxu0
        %575 = vmatprep.subr.mxu0 0.0
        %576 = vmatpush1.msra.mxu0 0.0
        %577 = vmatprep.subr.mxu0 0.0
        %578 = vmatpush1.msra.mxu0 0.0
        %579 = vmatprep.subr.mxu0 0.0
        %580 = vmatpush1.msra.mxu0 0.0
        %581 = vmatprep.subr.mxu0 0.0
        %582 = vmatpush1.msra.mxu0 0.0
        %583 = vmatprep.subr.mxu0 0.0
        %584 = vmatpush1.msra.mxu0 0.0
        %585 = vmatprep.subr.mxu0 0.0
        %586 = vmatpush1.msra.mxu0 0.0
        %587 = vmatprep.subr.mxu0 0.0
        %588 = vmatpush1.msra.mxu0 0.0
        %589 = vmatprep.subr.mxu0 0.0
        %590 = vmatpush1.msra.mxu0 0.0
        %591 = vmatprep.subr.mxu0 0.0
        %592 = vmatpush1.msra.mxu0 0.0
        %593 = vmatprep.subr.mxu0 0.0
        %594 = vmatpush1.msra.mxu0 0.0
        %595 = vmatprep.subr.mxu0 0.0
        %596 = vmatpush1.msra.mxu0 0.0
        %597 = vmatprep.subr.mxu0 0.0
        %598 = vmatpush1.msra.mxu0 0.0
        %599 = vmatprep.subr.mxu0 0.0
        %600 = vmatpush1.msra.mxu0 0.0
        %601 = vmatprep.subr.mxu0 0.0
        %602 = vmatpush1.msra.mxu0 0.0
        %603 = vmatprep.subr.mxu0 0.0
        %v604 = vand.u32 %v264, 4294901760
        %v605 = vsub.f32 %v264, %v604
        %v606 = vand.u32 %v605, 4294901760
        %607 = vmatpush1.msra.mxu0 %v606
        %608 = vmatprep.subr.mxu0 0.0
        %v609 = vand.u32 %v255, 4294901760
        %v610 = vsub.f32 %v255, %v609
        %v611 = vand.u32 %v610, 4294901760
        %612 = vmatpush1.msra.mxu0 %v611
        %613 = vmatprep.subr.mxu0 0.0
        %614 = vmatpush2.msra.mxu0 0.0
        %615 = vmatprep.subr.mxu0 0.0
        %616 = vmatpush2.msra.mxu0 0.0
        %617 = vmatprep.subr.mxu0 0.0
        %618 = vmatpush2.msra.mxu0 0.0
        %619 = vmatprep.subr.mxu0 0.0
        %620 = vmatpush2.msra.mxu0 0.0
        %621 = vmatprep.subr.mxu0 0.0
        %622 = vmatpush2.msra.mxu0 0.0
        %623 = vmatprep.subr.mxu0 0.0
        %624 = vmatpush2.msra.mxu0 0.0
        %625 = vmatprep.subr.mxu0 0.0
        %626 = vmatpush2.msra.mxu0 0.0
        %627 = vmatprep.subr.mxu0 0.0
        %628 = vmatpush2.msra.mxu0 0.0
        %629 = vmatprep.subr.mxu0 0.0
        %630 = vmatpush2.msra.mxu0 0.0
        %631 = vmatprep.subr.mxu0 0.0
        %632 = vmatpush2.msra.mxu0 0.0
        %633 = vmatprep.subr.mxu0 0.0
        %634 = vmatpush2.msra.mxu0 0.0
        %635 = vmatprep.subr.mxu0 0.0
        %636 = vmatpush2.msra.mxu0 0.0
        %637 = vmatprep.subr.mxu0 0.0
        %638 = vmatpush2.msra.mxu0 0.0
        %639 = vmatprep.subr.mxu0 0.0
        %640 = vmatpush2.msra.mxu0 0.0
        %641 = vmatprep.subr.mxu0 0.0
        %642 = vmatpush2.msra.mxu0 0.0
        %643 = vmatprep.subr.mxu0 0.0
        %644 = vmatpush2.msra.mxu0 0.0
        %645 = vmatprep.mubr.f32.mxu0 0.0
        %v646 = vand.u32 %v260, 4294901760
        %647 = vmatmul.mubr.f32.gmra.mxu0 %v646
        %v648 = vpop.f32.mrf.mxu0
        %v649 = vadd.f32 %v572, %v648
        %v650 = vpop.f32.mrf.mxu0
        %651 = vdwg.mxu0
        %652 = vmatprep.subr.mxu0 0.0
        %653 = vmatpush1.msra.mxu0 0.0
        %654 = vmatprep.subr.mxu0 0.0
        %655 = vmatpush1.msra.mxu0 0.0
        %656 = vmatprep.subr.mxu0 0.0
        %657 = vmatpush1.msra.mxu0 0.0
        %658 = vmatprep.subr.mxu0 0.0
        %659 = vmatpush1.msra.mxu0 0.0
        %660 = vmatprep.subr.mxu0 0.0
        %661 = vmatpush1.msra.mxu0 0.0
        %662 = vmatprep.subr.mxu0 0.0
        %663 = vmatpush1.msra.mxu0 0.0
        %664 = vmatprep.subr.mxu0 0.0
        %665 = vmatpush1.msra.mxu0 0.0
        %666 = vmatprep.subr.mxu0 0.0
        %667 = vmatpush1.msra.mxu0 0.0
        %668 = vmatprep.subr.mxu0 0.0
        %669 = vmatpush1.msra.mxu0 0.0
        %670 = vmatprep.subr.mxu0 0.0
        %671 = vmatpush1.msra.mxu0 0.0
        %672 = vmatprep.subr.mxu0 0.0
        %673 = vmatpush1.msra.mxu0 0.0
        %674 = vmatprep.subr.mxu0 0.0
        %675 = vmatpush1.msra.mxu0 0.0
        %676 = vmatprep.subr.mxu0 0.0
        %677 = vmatpush1.msra.mxu0 0.0
        %678 = vmatprep.subr.mxu0 0.0
        %679 = vmatpush1.msra.mxu0 0.0
        %680 = vmatprep.subr.mxu0 0.0
        %v681 = vand.u32 %v264, 4294901760
        %682 = vmatpush1.msra.mxu0 %v681
        %683 = vmatprep.subr.mxu0 0.0
        %v684 = vand.u32 %v255, 4294901760
        %685 = vmatpush1.msra.mxu0 %v684
        %686 = vmatprep.subr.mxu0 0.0
        %687 = vmatpush2.msra.mxu0 0.0
        %688 = vmatprep.subr.mxu0 0.0
        %689 = vmatpush2.msra.mxu0 0.0
        %690 = vmatprep.subr.mxu0 0.0
        %691 = vmatpush2.msra.mxu0 0.0
        %692 = vmatprep.subr.mxu0 0.0
        %693 = vmatpush2.msra.mxu0 0.0
        %694 = vmatprep.subr.mxu0 0.0
        %695 = vmatpush2.msra.mxu0 0.0
        %696 = vmatprep.subr.mxu0 0.0
        %697 = vmatpush2.msra.mxu0 0.0
        %698 = vmatprep.subr.mxu0 0.0
        %699 = vmatpush2.msra.mxu0 0.0
        %700 = vmatprep.subr.mxu0 0.0
        %701 = vmatpush2.msra.mxu0 0.0
        %702 = vmatprep.subr.mxu0 0.0
        %703 = vmatpush2.msra.mxu0 0.0
        %704 = vmatprep.subr.mxu0 0.0
        %705 = vmatpush2.msra.mxu0 0.0
        %706 = vmatprep.subr.mxu0 0.0
        %707 = vmatpush2.msra.mxu0 0.0
        %708 = vmatprep.subr.mxu0 0.0
        %709 = vmatpush2.msra.mxu0 0.0
        %710 = vmatprep.subr.mxu0 0.0
        %711 = vmatpush2.msra.mxu0 0.0
        %712 = vmatprep.subr.mxu0 0.0
        %713 = vmatpush2.msra.mxu0 0.0
        %714 = vmatprep.subr.mxu0 0.0
        %715 = vmatpush2.msra.mxu0 0.0
        %716 = vmatprep.subr.mxu0 0.0
        %717 = vmatpush2.msra.mxu0 0.0
        %718 = vmatprep.mubr.f32.mxu0 0.0
        %v719 = vand.u32 %v260, 4294901760
        %720 = vmatmul.mubr.f32.gmra.mxu0 %v719
        %v721 = vpop.f32.mrf.mxu0
        %v722 = vadd.f32 %v649, %v721
        %v723 = vpop.f32.mrf.mxu0
        %724 = vdwg.mxu0
        %vm725 = vcmask 261120
        %726 = vst.msk [vmem:[%s213] sm:$0xff] %vm725, %v722
        %s727 = sand.u32 %s125, 1
        %s728 = scalar_lea.sflag [#allocation4], %s727
        %s729 = sand.u32 %s125, 1
        %s730 = smul.addr %s729, 8
        %s731 = scalar_lea.vmem [#allocation3], %s730
        // Predicated region
        $region37: #{tpu_custom_call.1} parent=31 // pred_check
          %p732 = pneg %p135
        $region38: #{tpu_custom_call.1} parent=31 // pred_check_branch
          %734 = sbr.rel (%p732) target = $region40
        $region39: #{tpu_custom_call.1} parent=31 // pred_region
          %s736 = ssub.s32 128, 128
          %737 = vsyncadd %s728, %s736
          %s738 = sadd.s32 %s24, %s23
          %s739 = sadd.s32 %s738, %s22
          %s740 = smul.addr %s739, 128
          %s741 = scalar_lea.hbm %s3, %s740
          %s743 = sshll.u32 %s731, 4
          %s744 = int_to_ptr.vmem [resolvable:$true] %s743
          %746 = dma.vmem_to_hbm [thread:$0]  %s744, 128, %s741, %s728
        $region40: #{tpu_custom_call.1} parent=31 // pred_fallthru
          _
      $region32: #{tpu_custom_call.1} parent=5 // pred_fallthru
        _
      %p747 = scmp.le.s32.totalorder 2, %s12
      // Predicated region
      $region41: #{tpu_custom_call.1} parent=5 // pred_check
        %p748 = pneg %p747
      $region42: #{tpu_custom_call.1} parent=5 // pred_check_branch
        %750 = sbr.rel (%p748) target = $region44
      $region43: #{tpu_custom_call.1} parent=5 // pred_region
        %s751 = ssub.s32 %s12, 2
        // Predicated region
        $region45: #{tpu_custom_call.1} parent=43 // pred_check
          %p752 = pneg %p141
        $region46: #{tpu_custom_call.1} parent=43 // pred_check_branch
          %754 = sbr.rel (%p752) target = $region48
        $region47: #{tpu_custom_call.1} parent=43 // pred_region
          %s755 = sand.u32 %s126, 1
          %s756 = scalar_lea.sflag [#allocation4], %s755
          %s757 = sand.u32 %s126, 1
          %s758 = smul.addr %s757, 8
          %s759 = scalar_lea.vmem [#allocation3], %s758
          %760 = dma.done %s756, 128
        $region48: #{tpu_custom_call.1} parent=43 // pred_fallthru
          _
      $region44: #{tpu_custom_call.1} parent=5 // pred_fallthru
        _
    $region6: #{tpu_custom_call.1} parent=1 // loop_footer
      %s16 = sadd.s32 1, %s12
    $region7: #{tpu_custom_call.1} parent=1 // loop_footer_branch
      %11 = sbr.rel target = $region3
    $region8: #{tpu_custom_call.1} parent=1 // loop_exit
      _
    %761 = vsyncpa [#allocation4], 1
    %s762 = scalar_lea.sflag [#allocation4], 1
    %763 = vsyncpa %s762, 1

</llo_original>
